<compile_context>
chip_gen: v5e
topology: v5e:2x2
jax: 0.10.0
libtpu: 0.0.40
codegen_flags: <defaults>
</compile_context>

<pallas_src>
import functools

import jax
import jax.numpy as jnp
from jax.experimental import pallas as pl
from jax.experimental.pallas import tpu as pltpu

IN_FEATURES = 784
H1, H2 = 64, 32
NUM_CLASSES = 10


def _round_up(x, m):
    return (x + m - 1) // m * m


def mlp_kernel(x_ref, w1_ref, b1_ref, w2_ref, b2_ref, w3_ref, b3_ref, o_ref):
    # One grid step processes a (TB, 784) batch tile end-to-end:
    # 3 MXU matmuls + VPU bias/ReLU + EUP exp/log for log_softmax.
    # Cast to bf16 in-kernel (f32 arrives from HBM; no separate convert pass).
    x = x_ref[...].astype(jnp.bfloat16)                                  # (TB, 784) bf16

    h1 = jnp.dot(x, w1_ref[...], preferred_element_type=jnp.float32)    # (TB, 64) f32
    h1 = jnp.maximum(h1 + b1_ref[...], 0.0)

    h2 = jnp.dot(h1.astype(jnp.bfloat16), w2_ref[...],
                 preferred_element_type=jnp.float32)                    # (TB, 32) f32
    h2 = jnp.maximum(h2 + b2_ref[...], 0.0)

    h3 = jnp.dot(h2.astype(jnp.bfloat16), w3_ref[...],
                 preferred_element_type=jnp.float32)                    # (TB, 10) f32
    h3 = jnp.maximum(h3 + b3_ref[...], 0.0)

    # Numerically stable log_softmax over the 10 classes (minor dim padded /
    # masked by Mosaic automatically).
    m = jnp.max(h3, axis=1, keepdims=True)
    shifted = h3 - m
    lse = jnp.log(jnp.sum(jnp.exp(shifted), axis=1, keepdims=True))
    o_ref[...] = shifted - lse                                           # (TB, 10)


@functools.partial(jax.jit, static_argnames=("tb",))
def net_forward(x_nchw, params, *, tb=2048):
    """Forward pass of Net. x_nchw: (B, 1, 28, 28) float; returns (B, 10) f32."""
    w1, b1, w2, b2, w3, b3 = params
    B = x_nchw.shape[0]

    # Flatten only; the bf16 cast happens inside the kernel.
    x2d = x_nchw.reshape(B, IN_FEATURES).astype(jnp.float32)             # (B, 784) f32

    # Batch tile: big enough to amortize the ~0.35us/step overhead, small
    # enough for scoped VMEM (f32 TB=2048 tile is ~6.4 MiB, ~12.8 MiB double-
    # buffered), and capped so the grid has >=2 steps when the batch allows
    # (so the "parallel" axis uses both TensorCores on v7x).
    B8 = _round_up(B, 8)
    TB = max(8, min(tb, _round_up(-(-B8 // 2), 8)))
    B_pad = _round_up(B, TB)
    if B_pad != B:
        x2d = jnp.pad(x2d, ((0, B_pad - B), (0, 0)))

    w1b = w1.astype(jnp.bfloat16)                                        # (784, 64) bf16
    b1f = b1.astype(jnp.float32)                                         # (1, 64)
    w2b = w2.astype(jnp.bfloat16)                                        # (64, 32) bf16
    b2f = b2.astype(jnp.float32)                                         # (1, 32)
    w3b = w3.astype(jnp.bfloat16)                                        # (32, 10) bf16
    b3f = b3.astype(jnp.float32)                                         # (1, 10)

    grid = (B_pad // TB,)

    weight_bytes = (IN_FEATURES * H1 * 2 + H1 * 4
                    + H1 * H2 * 2 + H2 * 4
                    + H2 * NUM_CLASSES * 2 + NUM_CLASSES * 4)
    cost = pl.CostEstimate(
        flops=2 * B_pad * (IN_FEATURES * H1 + H1 * H2 + H2 * NUM_CLASSES),
        transcendentals=B_pad * (NUM_CLASSES + 1),
        bytes_accessed=(B_pad * IN_FEATURES * 4          # f32 input read
                        + weight_bytes                    # resident weights (once)
                        + B_pad * NUM_CLASSES * 4),       # f32 output write
    )

    out = pl.pallas_call(
        mlp_kernel,
        out_shape=jax.ShapeDtypeStruct((B_pad, NUM_CLASSES), jnp.float32),
        grid=grid,
        in_specs=[
            pl.BlockSpec((TB, IN_FEATURES), lambda i: (i, 0)),           # x tile
            pl.BlockSpec((IN_FEATURES, H1), lambda i: (0, 0)),           # w1 (resident)
            pl.BlockSpec((1, H1), lambda i: (0, 0)),                     # b1
            pl.BlockSpec((H1, H2), lambda i: (0, 0)),                    # w2
            pl.BlockSpec((1, H2), lambda i: (0, 0)),                     # b2
            pl.BlockSpec((H2, NUM_CLASSES), lambda i: (0, 0)),           # w3
            pl.BlockSpec((1, NUM_CLASSES), lambda i: (0, 0)),            # b3
        ],
        out_specs=pl.BlockSpec((TB, NUM_CLASSES), lambda i: (i, 0)),
        compiler_params=pltpu.CompilerParams(
            dimension_semantics=("parallel",),
            vmem_limit_bytes=32 * 1024 * 1024,
        ),
        cost_estimate=cost,
    )(x2d, w1b, b1f, w2b, b2f, w3b, b3f)

    return out[:B]


def init_params(key):
    # Deterministic init mirroring nn.Linear's U(-1/sqrt(fan_in), +1/sqrt(fan_in)).
    def linear(key, fan_in, fan_out):
        kw, kb = jax.random.split(key)
        bound = 1.0 / jnp.sqrt(float(fan_in))
        # Stored directly as (in, out) = transpose of PyTorch's (out, in).
        w = jax.random.uniform(kw, (fan_in, fan_out), jnp.float32, -bound, bound)
        b = jax.random.uniform(kb, (1, fan_out), jnp.float32, -bound, bound)
        return w, b

    k1, k2, k3 = jax.random.split(key, 3)
    w1, b1 = linear(k1, IN_FEATURES, H1)
    w2, b2 = linear(k2, H1, H2)
    w3, b3 = linear(k3, H2, NUM_CLASSES)
    return (w1, b1, w2, b2, w3, b3)


if __name__ == "__main__":
    key = jax.random.PRNGKey(0)
    kx, kp = jax.random.split(key)

    B = 2
    x = jax.random.normal(kx, (B, 1, 28, 28), jnp.float32)   # NCHW, MNIST-like
    params = init_params(kp)

    out = net_forward(x, params)
    out = jax.block_until_ready(out)

    # Sanity: log_softmax rows sum to 1 in probability space.
    row_sums = jnp.exp(out).sum(axis=1)
    assert out.shape == (B, 10)
    assert jnp.allclose(row_sums, 1.0, atol=1e-2)  # bf16 matmul tolerance
    assert jnp.all(jnp.isfinite(out))

    print("KERNEL_OK")
</pallas_src>

<mosaic_0001>
module attributes {stable_mosaic.version = 11 : i64} {
  func.func @mlp_kernel(%arg0: i32, %arg1: memref<8x784xf32, #tpu.memory_space<vmem>>, %arg2: memref<784x64xbf16, #tpu.memory_space<vmem>>, %arg3: memref<1x64xf32, #tpu.memory_space<vmem>>, %arg4: memref<64x32xbf16, #tpu.memory_space<vmem>>, %arg5: memref<1x32xf32, #tpu.memory_space<vmem>>, %arg6: memref<32x10xbf16, #tpu.memory_space<vmem>>, %arg7: memref<1x10xf32, #tpu.memory_space<vmem>>, %arg8: memref<8x10xf32, #tpu.memory_space<vmem>>) attributes {dimension_semantics = [#tpu.dimension_semantics<parallel>], iteration_bounds = array<i64: 1>, scalar_prefetch = 0 : i64, scratch_operands = 0 : i64, tpu.core_type = #tpu.core_type<tc>, window_params = [{transform_indices = @transform_0, window_bounds = array<i64: 8, 784>}, {pipeline_mode = #tpu.pipeline_mode<synchronous>, transform_indices = @transform_1, window_bounds = array<i64: 784, 64>}, {pipeline_mode = #tpu.pipeline_mode<synchronous>, transform_indices = @transform_2, window_bounds = array<i64: 1, 64>}, {pipeline_mode = #tpu.pipeline_mode<synchronous>, transform_indices = @transform_3, window_bounds = array<i64: 64, 32>}, {pipeline_mode = #tpu.pipeline_mode<synchronous>, transform_indices = @transform_4, window_bounds = array<i64: 1, 32>}, {pipeline_mode = #tpu.pipeline_mode<synchronous>, transform_indices = @transform_5, window_bounds = array<i64: 32, 10>}, {pipeline_mode = #tpu.pipeline_mode<synchronous>, transform_indices = @transform_6, window_bounds = array<i64: 1, 10>}, {transform_indices = @transform_7, window_bounds = array<i64: 8, 10>}]} {
    %c0 = arith.constant 0 : index
    %c0_0 = arith.constant 0 : index
    %0 = vector.load %arg1[%c0, %c0_0] : memref<8x784xf32, #tpu.memory_space<vmem>>, vector<8x784xf32>
    %1 = arith.truncf %0 : vector<8x784xf32> to vector<8x784xbf16>
    %c0_1 = arith.constant 0 : index
    %c0_2 = arith.constant 0 : index
    %2 = vector.load %arg2[%c0_1, %c0_2] : memref<784x64xbf16, #tpu.memory_space<vmem>>, vector<784x64xbf16>
    %cst = arith.constant dense<0.000000e+00> : vector<8x64xf32>
    %3 = tpu.matmul %1, %2, %cst {dimension_numbers = #tpu.dot_dimension_numbers<[1], [0], [0], [1], [0, 0, 1, 1], [], []>} : vector<8x784xbf16>, vector<784x64xbf16>, vector<8x64xf32> -> vector<8x64xf32>
    %c0_3 = arith.constant 0 : index
    %c0_4 = arith.constant 0 : index
    %4 = vector.load %arg3[%c0_3, %c0_4] : memref<1x64xf32, #tpu.memory_space<vmem>>, vector<1x64xf32>
    %5 = vector.broadcast %4 : vector<1x64xf32> to vector<8x64xf32>
    %6 = arith.addf %3, %5 : vector<8x64xf32>
    %cst_5 = arith.constant 0.000000e+00 : f32
    %7 = vector.broadcast %cst_5 : f32 to vector<8x64xf32>
    %8 = arith.maximumf %6, %7 : vector<8x64xf32>
    %9 = arith.truncf %8 : vector<8x64xf32> to vector<8x64xbf16>
    %c0_6 = arith.constant 0 : index
    %c0_7 = arith.constant 0 : index
    %10 = vector.load %arg4[%c0_6, %c0_7] : memref<64x32xbf16, #tpu.memory_space<vmem>>, vector<64x32xbf16>
    %cst_8 = arith.constant dense<0.000000e+00> : vector<8x32xf32>
    %11 = tpu.matmul %9, %10, %cst_8 {dimension_numbers = #tpu.dot_dimension_numbers<[1], [0], [0], [1], [0, 0, 1, 1], [], []>} : vector<8x64xbf16>, vector<64x32xbf16>, vector<8x32xf32> -> vector<8x32xf32>
    %c0_9 = arith.constant 0 : index
    %c0_10 = arith.constant 0 : index
    %12 = vector.load %arg5[%c0_9, %c0_10] : memref<1x32xf32, #tpu.memory_space<vmem>>, vector<1x32xf32>
    %13 = vector.broadcast %12 : vector<1x32xf32> to vector<8x32xf32>
    %14 = arith.addf %11, %13 : vector<8x32xf32>
    %cst_11 = arith.constant 0.000000e+00 : f32
    %15 = vector.broadcast %cst_11 : f32 to vector<8x32xf32>
    %16 = arith.maximumf %14, %15 : vector<8x32xf32>
    %17 = arith.truncf %16 : vector<8x32xf32> to vector<8x32xbf16>
    %c0_12 = arith.constant 0 : index
    %c0_13 = arith.constant 0 : index
    %18 = vector.load %arg6[%c0_12, %c0_13] : memref<32x10xbf16, #tpu.memory_space<vmem>>, vector<32x10xbf16>
    %cst_14 = arith.constant dense<0.000000e+00> : vector<8x10xf32>
    %19 = tpu.matmul %17, %18, %cst_14 {dimension_numbers = #tpu.dot_dimension_numbers<[1], [0], [0], [1], [0, 0, 1, 1], [], []>} : vector<8x32xbf16>, vector<32x10xbf16>, vector<8x10xf32> -> vector<8x10xf32>
    %c0_15 = arith.constant 0 : index
    %c0_16 = arith.constant 0 : index
    %20 = vector.load %arg7[%c0_15, %c0_16] : memref<1x10xf32, #tpu.memory_space<vmem>>, vector<1x10xf32>
    %21 = vector.broadcast %20 : vector<1x10xf32> to vector<8x10xf32>
    %22 = arith.addf %19, %21 : vector<8x10xf32>
    %cst_17 = arith.constant 0.000000e+00 : f32
    %23 = vector.broadcast %cst_17 : f32 to vector<8x10xf32>
    %24 = arith.maximumf %22, %23 : vector<8x10xf32>
    %cst_18 = arith.constant dense<0xFF800000> : vector<8xf32>
    %25 = vector.multi_reduction <maximumf>, %24, %cst_18 [1] : vector<8x10xf32> to vector<8xf32>
    %26 = vector.shape_cast %25 : vector<8xf32> to vector<8x1xf32>
    %27 = vector.broadcast %26 : vector<8x1xf32> to vector<8x10xf32>
    %28 = arith.subf %24, %27 : vector<8x10xf32>
    %29 = math.exp %28 : vector<8x10xf32>
    %cst_19 = arith.constant dense<0.000000e+00> : vector<8xf32>
    %30 = vector.multi_reduction <add>, %29, %cst_19 [1] : vector<8x10xf32> to vector<8xf32>
    %31 = vector.shape_cast %30 : vector<8xf32> to vector<8x1xf32>
    %32 = math.log %31 : vector<8x1xf32>
    %33 = vector.broadcast %32 : vector<8x1xf32> to vector<8x10xf32>
    %34 = arith.subf %28, %33 : vector<8x10xf32>
    %c0_20 = arith.constant 0 : index
    %c0_21 = arith.constant 0 : index
    %35 = vector.load %arg8[%c0_20, %c0_21] : memref<8x10xf32, #tpu.memory_space<vmem>>, vector<8x10xf32>
    tpu.vector_store %arg8[%c0_20, %c0_21], %34 {strides = array<i32>} : memref<8x10xf32, #tpu.memory_space<vmem>>, vector<8x10xf32>,
    return
  }
  func.func @transform_0(%arg0: i32) -> (i32, i32) {
    %c0_i32 = arith.constant 0 : i32
    %c0_i32_0 = arith.constant 0 : i32
    return %arg0, %c0_i32 : i32, i32
  }
  func.func @transform_1(%arg0: i32) -> (i32, i32) {
    %c0_i32 = arith.constant 0 : i32
    %c0_i32_0 = arith.constant 0 : i32
    %c0_i32_1 = arith.constant 0 : i32
    return %c0_i32, %c0_i32_0 : i32, i32
  }
  func.func @transform_2(%arg0: i32) -> (i32, i32) {
    %c0_i32 = arith.constant 0 : i32
    %c0_i32_0 = arith.constant 0 : i32
    %c0_i32_1 = arith.constant 0 : i32
    return %c0_i32, %c0_i32_0 : i32, i32
  }
  func.func @transform_3(%arg0: i32) -> (i32, i32) {
    %c0_i32 = arith.constant 0 : i32
    %c0_i32_0 = arith.constant 0 : i32
    %c0_i32_1 = arith.constant 0 : i32
    return %c0_i32, %c0_i32_0 : i32, i32
  }
  func.func @transform_4(%arg0: i32) -> (i32, i32) {
    %c0_i32 = arith.constant 0 : i32
    %c0_i32_0 = arith.constant 0 : i32
    %c0_i32_1 = arith.constant 0 : i32
    return %c0_i32, %c0_i32_0 : i32, i32
  }
  func.func @transform_5(%arg0: i32) -> (i32, i32) {
    %c0_i32 = arith.constant 0 : i32
    %c0_i32_0 = arith.constant 0 : i32
    %c0_i32_1 = arith.constant 0 : i32
    return %c0_i32, %c0_i32_0 : i32, i32
  }
  func.func @transform_6(%arg0: i32) -> (i32, i32) {
    %c0_i32 = arith.constant 0 : i32
    %c0_i32_0 = arith.constant 0 : i32
    %c0_i32_1 = arith.constant 0 : i32
    return %c0_i32, %c0_i32_0 : i32, i32
  }
  func.func @transform_7(%arg0: i32) -> (i32, i32) {
    %c0_i32 = arith.constant 0 : i32
    %c0_i32_0 = arith.constant 0 : i32
    return %arg0, %c0_i32 : i32, i32
  }
}

</mosaic_0001>

<llo_original>
// kernel: net_forward.1
$region0: #{net_forward.1}
  #allocation0 [shape = 'u32[]', space=smem, size = 0x4, offset = 0x4, fixed_abs, tag = 'smem constant byte address 0x4 - core index']
  #allocation1 [shape = 'u32[72,128]{1,0:T(1,128)}', space=vmem, size = 0x9000, scoped, tag = 'internal scratch']
  %s0 = inlined_call_operand.vmem [shape: f32[8,784], index: 0, kind: input, shape index: {}]
  %s1 = inlined_call_operand.vmem [shape: bf16[784,64], index: 1, kind: input, shape index: {}]
  %s2 = inlined_call_operand.vmem [shape: f32[1,64], index: 2, kind: input, shape index: {}]
  %s3 = inlined_call_operand.vmem [shape: bf16[64,32], index: 3, kind: input, shape index: {}]
  %s4 = inlined_call_operand.vmem [shape: f32[1,32], index: 4, kind: input, shape index: {}]
  %s5 = inlined_call_operand.vmem [shape: bf16[32,10], index: 5, kind: input, shape index: {}]
  %s6 = inlined_call_operand.vmem [shape: f32[1,10], index: 6, kind: input, shape index: {}]
  %s7 = inlined_call_operand.vmem [shape: f32[8,10], index: 7, kind: output, shape index: {}]
  %s8 = sld [smem:[#allocation0]]
  $region38: #{net_forward.1} parent=0
    _
  %s10 = ssub.s32 1, %s8
  %s11 = scalar_select 0, %s10, %s8
  // Predicated region
  $region2: #{net_forward.1} parent=0 // pred_check
    _
  $region3: #{net_forward.1} parent=0 // pred_check_branch
    %13 = sbr.rel (0) target = $region5
  $region4: #{net_forward.1} parent=0 // pred_region
    _
  $region5: #{net_forward.1} parent=0 // pred_fallthru
    _
  // Predicated region
  $region6: #{net_forward.1} parent=0 // pred_check
    _
  $region7: #{net_forward.1} parent=0 // pred_check_branch
    %15 = sbr.rel (0) target = $region9
  $region8: #{net_forward.1} parent=0 // pred_region
    _
  $region9: #{net_forward.1} parent=0 // pred_fallthru
    _
  // Predicated region
  $region10: #{net_forward.1} parent=0 // pred_check
    _
  $region11: #{net_forward.1} parent=0 // pred_check_branch
    %17 = sbr.rel (0) target = $region13
  $region12: #{net_forward.1} parent=0 // pred_region
    _
  $region13: #{net_forward.1} parent=0 // pred_fallthru
    _
  // Predicated region
  $region14: #{net_forward.1} parent=0 // pred_check
    _
  $region15: #{net_forward.1} parent=0 // pred_check_branch
    %19 = sbr.rel (0) target = $region17
  $region16: #{net_forward.1} parent=0 // pred_region
    _
  $region17: #{net_forward.1} parent=0 // pred_fallthru
    _
  // Predicated region
  $region18: #{net_forward.1} parent=0 // pred_check
    _
  $region19: #{net_forward.1} parent=0 // pred_check_branch
    %21 = sbr.rel (0) target = $region21
  $region20: #{net_forward.1} parent=0 // pred_region
    _
  $region21: #{net_forward.1} parent=0 // pred_fallthru
    _
  // Predicated region
  $region22: #{net_forward.1} parent=0 // pred_check
    _
  $region23: #{net_forward.1} parent=0 // pred_check_branch
    %23 = sbr.rel (0) target = $region25
  $region24: #{net_forward.1} parent=0 // pred_region
    _
  $region25: #{net_forward.1} parent=0 // pred_fallthru
    _
  // Predicated region
  $region26: #{net_forward.1} parent=0 // pred_check
    _
  $region27: #{net_forward.1} parent=0 // pred_check_branch
    %25 = sbr.rel (0) target = $region29
  $region28: #{net_forward.1} parent=0 // pred_region
    _
  $region29: #{net_forward.1} parent=0 // pred_fallthru
    _
  %v27 = vld [vmem:[%s0] sm:$0xff]
  %v28 = vld [vmem:[%s0 + $0x8] sm:$0xff]
  %v29 = vld [vmem:[%s0 + $0x10] sm:$0xff]
  %v30 = vld [vmem:[%s0 + $0x18] sm:$0xff]
  %v31 = vld [vmem:[%s0 + $0x20] sm:$0xff]
  %v32 = vld [vmem:[%s0 + $0x28] sm:$0xff]
  %v33 = vld [vmem:[%s0 + $0x30] sm:$0xff]
  %v34 = vpack.c.bf16 %v27, %v27
  %v35 = vpack.c.bf16 %v28, %v28
  %v36 = vpack.c.bf16 %v29, %v29
  %v37 = vpack.c.bf16 %v30, %v30
  %v38 = vpack.c.bf16 %v31, %v31
  %v39 = vpack.c.bf16 %v32, %v32
  %v40 = vpack.c.bf16 %v33, %v33
  %v41 = vld [vmem:[%s1] sm:$0xf]
  %v42 = vld [vmem:[%s1 + $0x4] sm:$0xf]
  %v43 = vld [vmem:[%s1 + $0x8] sm:$0xf]
  %v44 = vld [vmem:[%s1 + $0xc] sm:$0xf]
  %v45 = vld [vmem:[%s1 + $0x10] sm:$0xf]
  %v46 = vld [vmem:[%s1 + $0x14] sm:$0xf]
  %v47 = vld [vmem:[%s1 + $0x18] sm:$0xf]
  %v48 = vld [vmem:[%s1 + $0x1c] sm:$0xf]
  %v49 = vld [vmem:[%s1 + $0x20] sm:$0xf]
  %v50 = vld [vmem:[%s1 + $0x24] sm:$0xf]
  %v51 = vld [vmem:[%s1 + $0x28] sm:$0xf]
  %v52 = vld [vmem:[%s1 + $0x2c] sm:$0xf]
  %v53 = vld [vmem:[%s1 + $0x30] sm:$0xf]
  %v54 = vld [vmem:[%s1 + $0x34] sm:$0xf]
  %v55 = vld [vmem:[%s1 + $0x38] sm:$0xf]
  %v56 = vld [vmem:[%s1 + $0x3c] sm:$0xf]
  %v57 = vld [vmem:[%s1 + $0x40] sm:$0xf]
  %v58 = vld [vmem:[%s1 + $0x44] sm:$0xf]
  %v59 = vld [vmem:[%s1 + $0x48] sm:$0xf]
  %v60 = vld [vmem:[%s1 + $0x4c] sm:$0xf]
  %v61 = vld [vmem:[%s1 + $0x50] sm:$0xf]
  %v62 = vld [vmem:[%s1 + $0x54] sm:$0xf]
  %v63 = vld [vmem:[%s1 + $0x58] sm:$0xf]
  %v64 = vld [vmem:[%s1 + $0x5c] sm:$0xf]
  %v65 = vld [vmem:[%s1 + $0x60] sm:$0xf]
  %v66 = vld [vmem:[%s1 + $0x64] sm:$0xf]
  %v67 = vld [vmem:[%s1 + $0x68] sm:$0xf]
  %v68 = vld [vmem:[%s1 + $0x6c] sm:$0xf]
  %v69 = vld [vmem:[%s1 + $0x70] sm:$0xf]
  %v70 = vld [vmem:[%s1 + $0x74] sm:$0xf]
  %v71 = vld [vmem:[%s1 + $0x78] sm:$0xf]
  %v72 = vld [vmem:[%s1 + $0x7c] sm:$0xf]
  %v73 = vld [vmem:[%s1 + $0x80] sm:$0xf]
  %v74 = vld [vmem:[%s1 + $0x84] sm:$0xf]
  %v75 = vld [vmem:[%s1 + $0x88] sm:$0xf]
  %v76 = vld [vmem:[%s1 + $0x8c] sm:$0xf]
  %v77 = vld [vmem:[%s1 + $0x90] sm:$0xf]
  %v78 = vld [vmem:[%s1 + $0x94] sm:$0xf]
  %v79 = vld [vmem:[%s1 + $0x98] sm:$0xf]
  %v80 = vld [vmem:[%s1 + $0x9c] sm:$0xf]
  %v81 = vld [vmem:[%s1 + $0xa0] sm:$0xf]
  %v82 = vld [vmem:[%s1 + $0xa4] sm:$0xf]
  %v83 = vld [vmem:[%s1 + $0xa8] sm:$0xf]
  %v84 = vld [vmem:[%s1 + $0xac] sm:$0xf]
  %v85 = vld [vmem:[%s1 + $0xb0] sm:$0xf]
  %v86 = vld [vmem:[%s1 + $0xb4] sm:$0xf]
  %v87 = vld [vmem:[%s1 + $0xb8] sm:$0xf]
  %v88 = vld [vmem:[%s1 + $0xbc] sm:$0xf]
  %v89 = vld [vmem:[%s1 + $0xc0] sm:$0xf]
  %v90 = vld [vmem:[%s1 + $0xc4] sm:$0xf]
  %v91 = vld [vmem:[%s1 + $0xc8] sm:$0xf]
  %v92 = vld [vmem:[%s1 + $0xcc] sm:$0xf]
  %v93 = vld [vmem:[%s1 + $0xd0] sm:$0xf]
  %v94 = vld [vmem:[%s1 + $0xd4] sm:$0xf]
  %v95 = vld [vmem:[%s1 + $0xd8] sm:$0xf]
  %v96 = vld [vmem:[%s1 + $0xdc] sm:$0xf]
  %v97 = vld [vmem:[%s1 + $0xe0] sm:$0xf]
  %v98 = vld [vmem:[%s1 + $0xe4] sm:$0xf]
  %v99 = vld [vmem:[%s1 + $0xe8] sm:$0xf]
  %v100 = vld [vmem:[%s1 + $0xec] sm:$0xf]
  %v101 = vld [vmem:[%s1 + $0xf0] sm:$0xf]
  %v102 = vld [vmem:[%s1 + $0xf4] sm:$0xf]
  %v103 = vld [vmem:[%s1 + $0xf8] sm:$0xf]
  %v104 = vld [vmem:[%s1 + $0xfc] sm:$0xf]
  %v105 = vld [vmem:[%s1 + $0x100] sm:$0xf]
  %v106 = vld [vmem:[%s1 + $0x104] sm:$0xf]
  %v107 = vld [vmem:[%s1 + $0x108] sm:$0xf]
  %v108 = vld [vmem:[%s1 + $0x10c] sm:$0xf]
  %v109 = vld [vmem:[%s1 + $0x110] sm:$0xf]
  %v110 = vld [vmem:[%s1 + $0x114] sm:$0xf]
  %v111 = vld [vmem:[%s1 + $0x118] sm:$0xf]
  %v112 = vld [vmem:[%s1 + $0x11c] sm:$0xf]
  %v113 = vld [vmem:[%s1 + $0x120] sm:$0xf]
  %v114 = vld [vmem:[%s1 + $0x124] sm:$0xf]
  %v115 = vld [vmem:[%s1 + $0x128] sm:$0xf]
  %v116 = vld [vmem:[%s1 + $0x12c] sm:$0xf]
  %v117 = vld [vmem:[%s1 + $0x130] sm:$0xf]
  %v118 = vld [vmem:[%s1 + $0x134] sm:$0xf]
  %v119 = vld [vmem:[%s1 + $0x138] sm:$0xf]
  %v120 = vld [vmem:[%s1 + $0x13c] sm:$0xf]
  %v121 = vld [vmem:[%s1 + $0x140] sm:$0xf]
  %v122 = vld [vmem:[%s1 + $0x144] sm:$0xf]
  %v123 = vld [vmem:[%s1 + $0x148] sm:$0xf]
  %v124 = vld [vmem:[%s1 + $0x14c] sm:$0xf]
  %v125 = vld [vmem:[%s1 + $0x150] sm:$0xf]
  %v126 = vld [vmem:[%s1 + $0x154] sm:$0xf]
  %v127 = vld [vmem:[%s1 + $0x158] sm:$0xf]
  %v128 = vld [vmem:[%s1 + $0x15c] sm:$0xf]
  %v129 = vld [vmem:[%s1 + $0x160] sm:$0xf]
  %v130 = vld [vmem:[%s1 + $0x164] sm:$0xf]
  %v131 = vld [vmem:[%s1 + $0x168] sm:$0xf]
  %v132 = vld [vmem:[%s1 + $0x16c] sm:$0xf]
  %v133 = vld [vmem:[%s1 + $0x170] sm:$0xf]
  %v134 = vld [vmem:[%s1 + $0x174] sm:$0xf]
  %v135 = vld [vmem:[%s1 + $0x178] sm:$0xf]
  %v136 = vld [vmem:[%s1 + $0x17c] sm:$0xf]
  %v137 = vld [vmem:[%s1 + $0x180] sm:$0xf]
  %v138 = vld [vmem:[%s1 + $0x184] sm:$0xf]
  %v139 = vld [vmem:[%s2] sm:$0x1]
  %v141 = vperm.slane %v139, 0
  %v241 = vunpack.c.l.b16 %v41
  %v242 = vunpack.c.l.b16 %v42
  %v243 = vunpack.c.l.b16 %v43
  %v244 = vunpack.c.l.b16 %v44
  %v245 = vunpack.c.l.b16 %v45
  %v246 = vunpack.c.l.b16 %v46
  %v247 = vunpack.c.l.b16 %v47
  %v248 = vunpack.c.l.b16 %v48
  %v249 = vunpack.c.l.b16 %v49
  %v250 = vunpack.c.l.b16 %v50
  %v251 = vunpack.c.l.b16 %v51
  %v252 = vunpack.c.l.b16 %v52
  %v253 = vunpack.c.l.b16 %v53
  %v254 = vunpack.c.l.b16 %v54
  %v255 = vunpack.c.l.b16 %v55
  %v256 = vunpack.c.l.b16 %v56
  %v257 = vunpack.c.l.b16 %v57
  %v258 = vunpack.c.l.b16 %v58
  %v259 = vunpack.c.l.b16 %v59
  %v260 = vunpack.c.l.b16 %v60
  %v261 = vunpack.c.l.b16 %v61
  %v262 = vunpack.c.l.b16 %v62
  %v263 = vunpack.c.l.b16 %v63
  %v264 = vunpack.c.l.b16 %v64
  %v265 = vunpack.c.l.b16 %v65
  %v266 = vunpack.c.l.b16 %v66
  %v267 = vunpack.c.l.b16 %v67
  %v268 = vunpack.c.l.b16 %v68
  %v269 = vunpack.c.l.b16 %v69
  %v270 = vunpack.c.l.b16 %v70
  %v271 = vunpack.c.l.b16 %v71
  %v272 = vunpack.c.l.b16 %v72
  %v273 = vunpack.c.l.b16 %v73
  %v274 = vunpack.c.l.b16 %v74
  %v275 = vunpack.c.l.b16 %v75
  %v276 = vunpack.c.l.b16 %v76
  %v277 = vunpack.c.l.b16 %v77
  %v278 = vunpack.c.l.b16 %v78
  %v279 = vunpack.c.l.b16 %v79
  %v280 = vunpack.c.l.b16 %v80
  %v281 = vunpack.c.l.b16 %v81
  %v282 = vunpack.c.l.b16 %v82
  %v283 = vunpack.c.l.b16 %v83
  %v284 = vunpack.c.l.b16 %v84
  %v285 = vunpack.c.l.b16 %v85
  %v286 = vunpack.c.l.b16 %v86
  %v287 = vunpack.c.l.b16 %v87
  %v288 = vunpack.c.l.b16 %v88
  %v289 = vunpack.c.l.b16 %v89
  %v290 = vunpack.c.l.b16 %v90
  %v291 = vunpack.c.l.b16 %v91
  %v292 = vunpack.c.l.b16 %v92
  %v293 = vunpack.c.l.b16 %v93
  %v294 = vunpack.c.l.b16 %v94
  %v295 = vunpack.c.l.b16 %v95
  %v296 = vunpack.c.l.b16 %v96
  %v297 = vunpack.c.l.b16 %v97
  %v298 = vunpack.c.l.b16 %v98
  %v299 = vunpack.c.l.b16 %v99
  %v300 = vunpack.c.l.b16 %v100
  %v301 = vunpack.c.l.b16 %v101
  %v302 = vunpack.c.l.b16 %v102
  %v303 = vunpack.c.l.b16 %v103
  %v304 = vunpack.c.l.b16 %v104
  %v305 = vunpack.c.l.b16 %v105
  %v306 = vunpack.c.l.b16 %v106
  %v307 = vunpack.c.l.b16 %v107
  %v308 = vunpack.c.l.b16 %v108
  %v309 = vunpack.c.l.b16 %v109
  %v310 = vunpack.c.l.b16 %v110
  %v311 = vunpack.c.l.b16 %v111
  %v312 = vunpack.c.l.b16 %v112
  %v313 = vunpack.c.l.b16 %v113
  %v314 = vunpack.c.l.b16 %v114
  %v315 = vunpack.c.l.b16 %v115
  %v316 = vunpack.c.l.b16 %v116
  %v317 = vunpack.c.l.b16 %v117
  %v318 = vunpack.c.l.b16 %v118
  %v319 = vunpack.c.l.b16 %v119
  %v320 = vunpack.c.l.b16 %v120
  %v321 = vunpack.c.l.b16 %v121
  %v322 = vunpack.c.l.b16 %v122
  %v323 = vunpack.c.l.b16 %v123
  %v324 = vunpack.c.l.b16 %v124
  %v325 = vunpack.c.l.b16 %v125
  %v326 = vunpack.c.l.b16 %v126
  %v327 = vunpack.c.l.b16 %v127
  %v328 = vunpack.c.l.b16 %v128
  %v329 = vunpack.c.l.b16 %v129
  %v330 = vunpack.c.l.b16 %v130
  %v331 = vunpack.c.l.b16 %v131
  %v332 = vunpack.c.l.b16 %v132
  %v333 = vunpack.c.l.b16 %v133
  %v334 = vunpack.c.l.b16 %v134
  %v335 = vunpack.c.l.b16 %v135
  %v336 = vunpack.c.l.b16 %v136
  %v337 = vunpack.c.l.b16 %v137
  %v338 = vunpack.c.l.b16 %v138
  %v339 = vpack.c.b16 %v242, %v241
  %v340 = vpack.c.b16 %v244, %v243
  %v341 = vpack.c.b16 %v246, %v245
  %v342 = vpack.c.b16 %v248, %v247
  %v343 = vpack.c.b16 %v250, %v249
  %v344 = vpack.c.b16 %v252, %v251
  %v345 = vpack.c.b16 %v254, %v253
  %v346 = vpack.c.b16 %v256, %v255
  %v347 = vpack.c.b16 %v258, %v257
  %v348 = vpack.c.b16 %v260, %v259
  %v349 = vpack.c.b16 %v262, %v261
  %v350 = vpack.c.b16 %v264, %v263
  %v351 = vpack.c.b16 %v266, %v265
  %v352 = vpack.c.b16 %v268, %v267
  %v353 = vpack.c.b16 %v270, %v269
  %v354 = vpack.c.b16 %v272, %v271
  %v355 = vpack.c.b16 %v274, %v273
  %v356 = vpack.c.b16 %v276, %v275
  %v357 = vpack.c.b16 %v278, %v277
  %v358 = vpack.c.b16 %v280, %v279
  %v359 = vpack.c.b16 %v282, %v281
  %v360 = vpack.c.b16 %v284, %v283
  %v361 = vpack.c.b16 %v286, %v285
  %v362 = vpack.c.b16 %v288, %v287
  %v363 = vpack.c.b16 %v290, %v289
  %v364 = vpack.c.b16 %v292, %v291
  %v365 = vpack.c.b16 %v294, %v293
  %v366 = vpack.c.b16 %v296, %v295
  %v367 = vpack.c.b16 %v298, %v297
  %v368 = vpack.c.b16 %v300, %v299
  %v369 = vpack.c.b16 %v302, %v301
  %v370 = vpack.c.b16 %v304, %v303
  %v371 = vpack.c.b16 %v306, %v305
  %v372 = vpack.c.b16 %v308, %v307
  %v373 = vpack.c.b16 %v310, %v309
  %v374 = vpack.c.b16 %v312, %v311
  %v375 = vpack.c.b16 %v314, %v313
  %v376 = vpack.c.b16 %v316, %v315
  %v377 = vpack.c.b16 %v318, %v317
  %v378 = vpack.c.b16 %v320, %v319
  %v379 = vpack.c.b16 %v322, %v321
  %v380 = vpack.c.b16 %v324, %v323
  %v381 = vpack.c.b16 %v326, %v325
  %v382 = vpack.c.b16 %v328, %v327
  %v383 = vpack.c.b16 %v330, %v329
  %v384 = vpack.c.b16 %v332, %v331
  %v385 = vpack.c.b16 %v334, %v333
  %v386 = vpack.c.b16 %v336, %v335
  %v387 = vpack.c.b16 %v338, %v337
  %vm437 = vcmask 130048
  %v439 = vsel %vm437, %v40, 0
  %441 = vmatpush.bf16.msra.mxu0 %v346
  %442 = vmatpush.bf16.msra.mxu0 %v345
  %443 = vmatpush.bf16.msra.mxu0 %v344
  %444 = vmatpush.bf16.msra.mxu0 %v343
  %445 = vmatpush.bf16.msra.mxu0 %v342
  %446 = vmatpush.bf16.msra.mxu0 %v341
  %447 = vmatpush.bf16.msra.mxu0 %v340
  %448 = vmatpush.bf16.msra.mxu0 %v339
  %449 = vmatmul.bf16.gmra.mxu0 %v34
  %v450 = vpop.f32.mrf.mxu0
  %v451 = vadd.f32 %v141, %v450
  %v452 = vpop.f32.mrf.mxu0
  %453 = vdwg.mxu0
  %454 = vmatpush.bf16.msra.mxu0 %v354
  %455 = vmatpush.bf16.msra.mxu0 %v353
  %456 = vmatpush.bf16.msra.mxu0 %v352
  %457 = vmatpush.bf16.msra.mxu0 %v351
  %458 = vmatpush.bf16.msra.mxu0 %v350
  %459 = vmatpush.bf16.msra.mxu0 %v349
  %460 = vmatpush.bf16.msra.mxu0 %v348
  %461 = vmatpush.bf16.msra.mxu0 %v347
  %462 = vmatmul.bf16.gmra.mxu0 %v35
  %v463 = vpop.f32.mrf.mxu0
  %v464 = vadd.f32 %v451, %v463
  %v465 = vpop.f32.mrf.mxu0
  %466 = vdwg.mxu0
  %467 = vmatpush.bf16.msra.mxu0 %v362
  %468 = vmatpush.bf16.msra.mxu0 %v361
  %469 = vmatpush.bf16.msra.mxu0 %v360
  %470 = vmatpush.bf16.msra.mxu0 %v359
  %471 = vmatpush.bf16.msra.mxu0 %v358
  %472 = vmatpush.bf16.msra.mxu0 %v357
  %473 = vmatpush.bf16.msra.mxu0 %v356
  %474 = vmatpush.bf16.msra.mxu0 %v355
  %475 = vmatmul.bf16.gmra.mxu0 %v36
  %v476 = vpop.f32.mrf.mxu0
  %v477 = vadd.f32 %v464, %v476
  %v478 = vpop.f32.mrf.mxu0
  %479 = vdwg.mxu0
  %480 = vmatpush.bf16.msra.mxu0 %v370
  %481 = vmatpush.bf16.msra.mxu0 %v369
  %482 = vmatpush.bf16.msra.mxu0 %v368
  %483 = vmatpush.bf16.msra.mxu0 %v367
  %484 = vmatpush.bf16.msra.mxu0 %v366
  %485 = vmatpush.bf16.msra.mxu0 %v365
  %486 = vmatpush.bf16.msra.mxu0 %v364
  %487 = vmatpush.bf16.msra.mxu0 %v363
  %488 = vmatmul.bf16.gmra.mxu0 %v37
  %v489 = vpop.f32.mrf.mxu0
  %v490 = vadd.f32 %v477, %v489
  %v491 = vpop.f32.mrf.mxu0
  %492 = vdwg.mxu0
  %493 = vmatpush.bf16.msra.mxu0 %v378
  %494 = vmatpush.bf16.msra.mxu0 %v377
  %495 = vmatpush.bf16.msra.mxu0 %v376
  %496 = vmatpush.bf16.msra.mxu0 %v375
  %497 = vmatpush.bf16.msra.mxu0 %v374
  %498 = vmatpush.bf16.msra.mxu0 %v373
  %499 = vmatpush.bf16.msra.mxu0 %v372
  %500 = vmatpush.bf16.msra.mxu0 %v371
  %501 = vmatmul.bf16.gmra.mxu0 %v38
  %v502 = vpop.f32.mrf.mxu0
  %v503 = vadd.f32 %v490, %v502
  %v504 = vpop.f32.mrf.mxu0
  %505 = vdwg.mxu0
  %506 = vmatpush.bf16.msra.mxu0 %v386
  %507 = vmatpush.bf16.msra.mxu0 %v385
  %508 = vmatpush.bf16.msra.mxu0 %v384
  %509 = vmatpush.bf16.msra.mxu0 %v383
  %510 = vmatpush.bf16.msra.mxu0 %v382
  %511 = vmatpush.bf16.msra.mxu0 %v381
  %512 = vmatpush.bf16.msra.mxu0 %v380
  %513 = vmatpush.bf16.msra.mxu0 %v379
  %514 = vmatmul.bf16.gmra.mxu0 %v39
  %v515 = vpop.f32.mrf.mxu0
  %v516 = vadd.f32 %v503, %v515
  %v517 = vpop.f32.mrf.mxu0
  %518 = vdwg.mxu0
  %519 = vmatpush.bf16.msra.mxu0 0
  %520 = vmatpush.bf16.msra.mxu0 0
  %521 = vmatpush.bf16.msra.mxu0 0
  %522 = vmatpush.bf16.msra.mxu0 0
  %523 = vmatpush.bf16.msra.mxu0 0
  %524 = vmatpush.bf16.msra.mxu0 0
  %525 = vmatpush.bf16.msra.mxu0 0
  %526 = vmatpush.bf16.msra.mxu0 %v387
  %527 = vmatmul.bf16.gmra.mxu0 %v439
  %v528 = vpop.f32.mrf.mxu0
  %v529 = vadd.f32 %v516, %v528
  %v530 = vpop.f32.mrf.mxu0
  %531 = vdwg.mxu0
  %v532 = vmax.f32 %v529, 0.0
  %v533 = vpack.c.bf16 %v532, %v532
  %v534 = vld [vmem:[%s3] sm:$0xf]
  %v535 = vld [vmem:[%s3 + $0x4] sm:$0xf]
  %v536 = vld [vmem:[%s3 + $0x8] sm:$0xf]
  %v537 = vld [vmem:[%s3 + $0xc] sm:$0xf]
  %v538 = vld [vmem:[%s3 + $0x10] sm:$0xf]
  %v539 = vld [vmem:[%s3 + $0x14] sm:$0xf]
  %v540 = vld [vmem:[%s3 + $0x18] sm:$0xf]
  %v541 = vld [vmem:[%s3 + $0x1c] sm:$0xf]
  %v542 = vld [vmem:[%s4] sm:$0x1]
  %v544 = vperm.slane %v542, 0
  %v554 = vunpack.c.l.b16 %v534
  %v555 = vunpack.c.l.b16 %v535
  %v556 = vunpack.c.l.b16 %v536
  %v557 = vunpack.c.l.b16 %v537
  %v558 = vunpack.c.l.b16 %v538
  %v559 = vunpack.c.l.b16 %v539
  %v560 = vunpack.c.l.b16 %v540
  %v561 = vunpack.c.l.b16 %v541
  %v562 = vpack.c.b16 %v555, %v554
  %v563 = vpack.c.b16 %v557, %v556
  %v564 = vpack.c.b16 %v559, %v558
  %v565 = vpack.c.b16 %v561, %v560
  %vm570 = vcmask 523264
  %v572 = vsel %vm570, %v533, 0
  %574 = vmatpush.bf16.msra.mxu0 0
  %575 = vmatpush.bf16.msra.mxu0 0
  %576 = vmatpush.bf16.msra.mxu0 0
  %577 = vmatpush.bf16.msra.mxu0 0
  %578 = vmatpush.bf16.msra.mxu0 %v565
  %579 = vmatpush.bf16.msra.mxu0 %v564
  %580 = vmatpush.bf16.msra.mxu0 %v563
  %581 = vmatpush.bf16.msra.mxu0 %v562
  %582 = vmatmul.bf16.gmra.mxu0 %v572
  %v583 = vpop.f32.mrf.mxu0
  %v584 = vadd.f32 %v544, %v583
  %v585 = vpop.f32.mrf.mxu0
  %586 = vdwg.mxu0
  %v587 = vmax.f32 %v584, 0.0
  %v588 = vpack.c.bf16 %v587, %v587
  %v589 = vld [vmem:[%s5] sm:$0xf]
  %v590 = vld [vmem:[%s5 + $0x4] sm:$0xf]
  %v591 = vld [vmem:[%s5 + $0x8] sm:$0xf]
  %v592 = vld [vmem:[%s5 + $0xc] sm:$0xf]
  %v593 = vld [vmem:[%s6] sm:$0x1]
  %v595 = vperm.slane %v593, 0
  %v601 = vunpack.c.l.b16 %v589
  %v602 = vunpack.c.l.b16 %v590
  %v603 = vunpack.c.l.b16 %v591
  %v604 = vunpack.c.l.b16 %v592
  %v605 = vpack.c.b16 %v602, %v601
  %v606 = vpack.c.b16 %v604, %v603
  %vm609 = vcmask 261120
  %v611 = vsel %vm609, %v588, 0
  %613 = vmatpush.bf16.msra.mxu0 0
  %614 = vmatpush.bf16.msra.mxu0 0
  %615 = vmatpush.bf16.msra.mxu0 0
  %616 = vmatpush.bf16.msra.mxu0 0
  %617 = vmatpush.bf16.msra.mxu0 0
  %618 = vmatpush.bf16.msra.mxu0 0
  %619 = vmatpush.bf16.msra.mxu0 %v606
  %620 = vmatpush.bf16.msra.mxu0 %v605
  %621 = vmatmul.bf16.gmra.mxu0 %v611
  %v622 = vpop.f32.mrf.mxu0
  %v623 = vadd.f32 %v595, %v622
  %v624 = vpop.f32.mrf.mxu0
  %625 = vdwg.mxu0
  %v626 = vmax.f32 %v623, 0.0
  %vm627 = vcmask 80896
  %v628 = vsel %vm627, %v626, -inf
  %629 = vmax.xlane.f32.xlu0 %v628
  %v630 = vpop.xlane.xlu0 %629
  %v631 = vsub.f32 %v626, %v630
  %v632 = vmul.f32 %v631, 1.442695
  %v633 = vpow.pop %v632
  %v634 = vsel %vm627, %v633, 0.0
  %635 = vadd.xlane.f32.xlu0 %v634
  %v636 = vpop.xlane.xlu0 %635
  %v637 = vlog2.pop %v636
  %v638 = vmul.f32 %v637, 0.6931472
  %v639 = vsub.f32 %v631, %v638
  %640 = vst.msk [vmem:[%s7] sm:$0xff] %vm627, %v639
  // Predicated region
  $region30: #{net_forward.1} parent=0 // pred_check
    _
  $region31: #{net_forward.1} parent=0 // pred_check_branch
    %642 = sbr.rel (0) target = $region33
  $region32: #{net_forward.1} parent=0 // pred_region
    _
  $region33: #{net_forward.1} parent=0 // pred_fallthru
    _
  // Predicated region
  $region34: #{net_forward.1} parent=0 // pred_check
    _
  $region35: #{net_forward.1} parent=0 // pred_check_branch
    %644 = sbr.rel (0) target = $region37
  $region36: #{net_forward.1} parent=0 // pred_region
    _
  $region37: #{net_forward.1} parent=0 // pred_fallthru
    _

</llo_original>
